<compile_context>
chip_gen: v5e
topology: v5e:2x2
jax: 0.10.0
libtpu: 0.0.40
codegen_flags: <defaults>
</compile_context>

<pallas_src>
import functools

import jax
import jax.numpy as jnp
from jax.experimental import pallas as pl
from jax.experimental.pallas import tpu as pltpu

_LANES = 128
_SUBLANES = 8
_MAX_TILE_ROWS = 2048          # (2048, 128) f32 = 1 MiB/block; 2 in x 2 buf = 4 MiB
_LN2 = 0.6931471805599453


def _round_up(x, m):
    return ((x + m - 1) // m) * m


def _num_core_splits():
    """Best-effort TensorCore count per chip: 2 on v7x-style chips, else 1."""
    try:
        info = pltpu.get_tpu_info()
    except Exception:
        return 1
    for attr in ("num_cores", "cores_per_chip", "num_tensorcores",
                 "tensorcores_per_chip", "core_count"):
        v = getattr(info, attr, None)
        if isinstance(v, int) and v >= 2:
            return 2
    return 1


def _logcosh_kernel(*refs, n_rows_valid, chunks_per_core, tile_rows,
                    needs_mask, with_count):
    if with_count:
        yt_ref, yp_ref, sum_ref, cnt_ref, loss_acc, cnt_acc = refs
    else:
        yt_ref, yp_ref, sum_ref, loss_acc = refs
        cnt_ref = cnt_acc = None

    j = pl.program_id(1)

    @pl.when(j == 0)
    def _():
        loss_acc[...] = jnp.zeros_like(loss_acc)
        if with_count:
            cnt_acc[...] = jnp.zeros_like(cnt_acc)

    yt = yt_ref[...].astype(jnp.float32)
    yp = yp_ref[...].astype(jnp.float32)
    d = (yt - yp) + jnp.float32(1e-12)
    ad = jnp.abs(d)
    # log(cosh(d)) == |d| + log(1 + exp(-2|d|)) - ln2; the constant -ln2 is
    # hoisted to the wrapper (subtracted once after the scalar reduce).
    loss = ad + jnp.log(1.0 + jnp.exp(-2.0 * ad))
    nz = (yp != 0.0).astype(jnp.float32) if with_count else None

    def _fold(x):
        # (tile_rows, 128) -> (8, 128): vreg-wise adds only, no cross-lane work.
        return jnp.sum(x.reshape(-1, _SUBLANES, _LANES), axis=0)

    def _accumulate(l, c):
        loss_acc[...] += _fold(l)
        if with_count:
            cnt_acc[...] += _fold(c)

    if not needs_mask:
        _accumulate(loss, nz)
    else:
        base_row = (pl.program_id(0) * chunks_per_core + j) * tile_rows

        @pl.when(base_row + tile_rows <= n_rows_valid)
        def _():                              # common path: fully valid block
            _accumulate(loss, nz)

        @pl.when(base_row + tile_rows > n_rows_valid)
        def _():                              # boundary / clamped-duplicate block
            row_ids = base_row + jax.lax.broadcasted_iota(
                jnp.int32, (tile_rows, _LANES), 0)
            valid = row_ids < n_rows_valid
            lm = jnp.where(valid, loss, 0.0)
            cm = jnp.where(valid, nz, 0.0) if with_count else None
            _accumulate(lm, cm)

    @pl.when(j == pl.num_programs(1) - 1)
    def _():
        sum_ref[...] = loss_acc[...]
        if with_count:
            cnt_ref[...] = cnt_acc[...]


def _reduce_sums(yt2, yp2, exclude_zeros):
    """Returns (sum over all elements of |d|+log(1+exp(-2|d|)), nnz or None)."""
    rows = yt2.shape[0]
    splits = _num_core_splits()
    tile_rows = min(_MAX_TILE_ROWS, _round_up(rows, _SUBLANES))
    total_chunks = pl.cdiv(rows, tile_rows)
    chunks_per_core = pl.cdiv(total_chunks, splits)
    covered_rows = splits * chunks_per_core * tile_rows
    needs_mask = covered_rows > rows          # static (trace-time) decision

    def in_index_map(i, j):
        # Clamp so over-assigned chunks re-read a valid block; their
        # contribution is zeroed by the per-block in-kernel mask.
        return (jnp.minimum(i * chunks_per_core + j, total_chunks - 1), 0)

    in_spec = pl.BlockSpec((tile_rows, _LANES), in_index_map)
    out_spec = pl.BlockSpec((_SUBLANES, _LANES), lambda i, j: (i, 0))

    out_shape = [jax.ShapeDtypeStruct((splits * _SUBLANES, _LANES), jnp.float32)]
    out_specs = [out_spec]
    scratch = [pltpu.VMEM((_SUBLANES, _LANES), jnp.float32)]
    if exclude_zeros:
        out_shape.append(
            jax.ShapeDtypeStruct((splits * _SUBLANES, _LANES), jnp.float32))
        out_specs.append(out_spec)
        scratch.append(pltpu.VMEM((_SUBLANES, _LANES), jnp.float32))

    kernel = functools.partial(
        _logcosh_kernel,
        n_rows_valid=rows,
        chunks_per_core=chunks_per_core,
        tile_rows=tile_rows,
        needs_mask=needs_mask,
        with_count=exclude_zeros,
    )

    results = pl.pallas_call(
        kernel,
        out_shape=tuple(out_shape),
        grid_spec=pltpu.PrefetchScalarGridSpec(
            num_scalar_prefetch=0,
            grid=(splits, chunks_per_core),
            in_specs=[in_spec, in_spec],
            out_specs=out_specs,
            scratch_shapes=scratch,
        ),
        compiler_params=pltpu.CompilerParams(
            # TODO(synk): on v7x verify "parallel" really shards axis 0 across
            # both TensorCores; if not, switch it to pltpu.CORE_PARALLEL.
            dimension_semantics=("parallel", "arbitrary"),
            vmem_limit_bytes=32 * 1024 * 1024,
        ),
    )(yt2, yp2)

    if exclude_zeros:
        loss_part, cnt_part = results
        return jnp.sum(loss_part), jnp.sum(cnt_part)
    if isinstance(results, (tuple, list)):
        results = results[0]
    return jnp.sum(results), None


def log_cosh_loss(y_t, y_prime_t, exclude_zeros=False):
    """Pallas implementation of LogCoshLoss.forward."""
    y_t = jnp.asarray(y_t)
    y_prime_t = jnp.asarray(y_prime_t)
    assert y_t.shape == y_prime_t.shape

    n_elems = y_t.size
    yt_flat = y_t.reshape(-1)
    yp_flat = y_prime_t.reshape(-1)

    rows = n_elems // _LANES          # kernel handles the first rows*128 elems
    n_main = rows * _LANES
    tail = n_elems - n_main           # <128 trailing elements -> plain JAX

    loss_sum = jnp.float32(0.0)
    nnz = jnp.float32(0.0)

    if rows > 0:
        yt2 = yt_flat[:n_main].reshape(rows, _LANES)   # free, contiguous view
        yp2 = yp_flat[:n_main].reshape(rows, _LANES)
        acc_sum, cnt_sum = _reduce_sums(yt2, yp2, exclude_zeros)
        # -ln2 hoisted out of the per-element formula; corrected exactly here
        # (masked / padded elements contributed exactly 0 to acc_sum).
        loss_sum = acc_sum - jnp.float32(n_main) * jnp.float32(_LN2)
        if exclude_zeros:
            nnz = cnt_sum

    if tail > 0:
        # Ragged tail (<128 elements): tiny, plain JAX — avoids a full pad copy.
        yt_t = yt_flat[n_main:].astype(jnp.float32)
        yp_t = yp_flat[n_main:].astype(jnp.float32)
        d = (yt_t - yp_t) + jnp.float32(1e-12)
        ad = jnp.abs(d)
        loss_sum = loss_sum + jnp.sum(
            ad + jnp.log(1.0 + jnp.exp(-2.0 * ad)) - jnp.float32(_LN2))
        if exclude_zeros:
            nnz = nnz + jnp.sum((yp_t != 0.0).astype(jnp.float32))

    if exclude_zeros:
        # Matches torch: sum(loss) / count_nonzero(y_prime_t).
        # (nnz == 0 -> inf/nan, same behavior as the torch reference.)
        return loss_sum / nnz
    return loss_sum / jnp.float32(n_elems)


if __name__ == "__main__":
    key = jax.random.PRNGKey(0)
    k1, k2 = jax.random.split(key)
    # Small image-like shapes (NCHW), consistent with a per-pixel loss.
    y_t = jax.random.normal(k1, (2, 4, 16, 16), dtype=jnp.float32)
    y_prime_t = jax.random.normal(k2, (2, 4, 16, 16), dtype=jnp.float32)
    # Inject exact zeros so exclude_zeros=True is exercised meaningfully.
    y_prime_t = y_prime_t.at[0, 0, :4, :4].set(0.0)

    out_mean = jax.block_until_ready(log_cosh_loss(y_t, y_prime_t))
    out_excl = jax.block_until_ready(
        log_cosh_loss(y_t, y_prime_t, exclude_zeros=True))

    # Reference check in plain JAX (naive formula, like the torch spec).
    diff = (y_t - y_prime_t) + 1e-12
    loss = jnp.log(jnp.cosh(diff))
    ref_mean = jnp.mean(loss)
    ref_excl = jnp.sum(loss) / jnp.count_nonzero(y_prime_t).astype(jnp.float32)
    assert jnp.allclose(out_mean, ref_mean, rtol=1e-5, atol=1e-5), (out_mean, ref_mean)
    assert jnp.allclose(out_excl, ref_excl, rtol=1e-5, atol=1e-5), (out_excl, ref_excl)

    print("KERNEL_OK")
</pallas_src>

<mosaic_0001>
module attributes {stable_mosaic.version = 11 : i64} {
  func.func @_logcosh_kernel(%arg0: i32, %arg1: i32, %arg2: memref<16x128xf32, #tpu.memory_space<vmem>>, %arg3: memref<16x128xf32, #tpu.memory_space<vmem>>, %arg4: memref<8x128xf32, #tpu.memory_space<vmem>>, %arg5: memref<8x128xf32, #tpu.memory_space<vmem>>) attributes {dimension_semantics = [#tpu.dimension_semantics<parallel>, #tpu.dimension_semantics<arbitrary>], iteration_bounds = array<i64: 1, 1>, scalar_prefetch = 0 : i64, scratch_operands = 1 : i64, tpu.core_type = #tpu.core_type<tc>, window_params = [{transform_indices = @transform_0, window_bounds = array<i64: 16, 128>}, {transform_indices = @transform_1, window_bounds = array<i64: 16, 128>}, {transform_indices = @transform_2, window_bounds = array<i64: 8, 128>}]} {
    %c0_i32 = arith.constant 0 : i32
    %0 = arith.cmpi eq, %arg1, %c0_i32 : i32
    %1 = arith.extui %0 : i1 to i32
    %c0_i32_0 = arith.constant 0 : i32
    %2 = arith.cmpi ne, %1, %c0_i32_0 : i32
    scf.if %2 {
      %cst_13 = arith.constant 0.000000e+00 : f32
      %24 = vector.broadcast %cst_13 : f32 to vector<8x128xf32>
      %c0_14 = arith.constant 0 : index
      %c0_15 = arith.constant 0 : index
      %25 = vector.load %arg5[%c0_14, %c0_15] : memref<8x128xf32, #tpu.memory_space<vmem>>, vector<8x128xf32>
      tpu.vector_store %arg5[%c0_14, %c0_15], %24 {strides = array<i32>} : memref<8x128xf32, #tpu.memory_space<vmem>>, vector<8x128xf32>,
    } else {
    }
    %c0 = arith.constant 0 : index
    %c0_1 = arith.constant 0 : index
    %3 = vector.load %arg2[%c0, %c0_1] : memref<16x128xf32, #tpu.memory_space<vmem>>, vector<16x128xf32>
    %c0_2 = arith.constant 0 : index
    %c0_3 = arith.constant 0 : index
    %4 = vector.load %arg3[%c0_2, %c0_3] : memref<16x128xf32, #tpu.memory_space<vmem>>, vector<16x128xf32>
    %5 = arith.subf %3, %4 : vector<16x128xf32>
    %cst = arith.constant 9.99999996E-13 : f32
    %6 = vector.broadcast %cst : f32 to vector<16x128xf32>
    %7 = arith.addf %5, %6 : vector<16x128xf32>
    %8 = math.absf %7 : vector<16x128xf32>
    %cst_4 = arith.constant -2.000000e+00 : f32
    %9 = vector.broadcast %cst_4 : f32 to vector<16x128xf32>
    %10 = arith.mulf %9, %8 : vector<16x128xf32>
    %11 = math.exp %10 : vector<16x128xf32>
    %cst_5 = arith.constant 1.000000e+00 : f32
    %12 = vector.broadcast %cst_5 : f32 to vector<16x128xf32>
    %13 = arith.addf %12, %11 : vector<16x128xf32>
    %14 = math.log %13 : vector<16x128xf32>
    %15 = arith.addf %8, %14 : vector<16x128xf32>
    %c0_6 = arith.constant 0 : index
    %c0_7 = arith.constant 0 : index
    %16 = vector.load %arg5[%c0_6, %c0_7] : memref<8x128xf32, #tpu.memory_space<vmem>>, vector<8x128xf32>
    %17 = vector.shape_cast %15 : vector<16x128xf32> to vector<2x8x128xf32>
    %cst_8 = arith.constant dense<0.000000e+00> : vector<8x128xf32>
    %18 = vector.multi_reduction <add>, %17, %cst_8 [0] : vector<2x8x128xf32> to vector<8x128xf32>
    %19 = arith.addf %16, %18 : vector<8x128xf32>
    %c0_9 = arith.constant 0 : index
    %c0_10 = arith.constant 0 : index
    %20 = vector.load %arg5[%c0_9, %c0_10] : memref<8x128xf32, #tpu.memory_space<vmem>>, vector<8x128xf32>
    tpu.vector_store %arg5[%c0_9, %c0_10], %19 {strides = array<i32>} : memref<8x128xf32, #tpu.memory_space<vmem>>, vector<8x128xf32>,
    %c0_i32_11 = arith.constant 0 : i32
    %21 = arith.cmpi eq, %arg1, %c0_i32_11 : i32
    %22 = arith.extui %21 : i1 to i32
    %c0_i32_12 = arith.constant 0 : i32
    %23 = arith.cmpi ne, %22, %c0_i32_12 : i32
    scf.if %23 {
      %c0_13 = arith.constant 0 : index
      %c0_14 = arith.constant 0 : index
      %24 = vector.load %arg5[%c0_13, %c0_14] : memref<8x128xf32, #tpu.memory_space<vmem>>, vector<8x128xf32>
      %c0_15 = arith.constant 0 : index
      %c0_16 = arith.constant 0 : index
      %25 = vector.load %arg4[%c0_15, %c0_16] : memref<8x128xf32, #tpu.memory_space<vmem>>, vector<8x128xf32>
      tpu.vector_store %arg4[%c0_15, %c0_16], %24 {strides = array<i32>} : memref<8x128xf32, #tpu.memory_space<vmem>>, vector<8x128xf32>,
    } else {
    }
    return
  }
  func.func @transform_0(%arg0: i32, %arg1: i32) -> (i32, i32) {
    %c1_i32 = arith.constant 1 : i32
    %0 = arith.muli %arg0, %c1_i32 : i32
    %1 = arith.addi %0, %arg1 : i32
    %c0_i32 = arith.constant 0 : i32
    %2 = arith.minsi %1, %c0_i32 : i32
    %c0_i32_0 = arith.constant 0 : i32
    %c0_i32_1 = arith.constant 0 : i32
    return %2, %c0_i32_0 : i32, i32
  }
  func.func @transform_1(%arg0: i32, %arg1: i32) -> (i32, i32) {
    %c1_i32 = arith.constant 1 : i32
    %0 = arith.muli %arg0, %c1_i32 : i32
    %1 = arith.addi %0, %arg1 : i32
    %c0_i32 = arith.constant 0 : i32
    %2 = arith.minsi %1, %c0_i32 : i32
    %c0_i32_0 = arith.constant 0 : i32
    %c0_i32_1 = arith.constant 0 : i32
    return %2, %c0_i32_0 : i32, i32
  }
  func.func @transform_2(%arg0: i32, %arg1: i32) -> (i32, i32) {
    %c0_i32 = arith.constant 0 : i32
    %c0_i32_0 = arith.constant 0 : i32
    return %arg0, %c0_i32 : i32, i32
  }
}

</mosaic_0001>

<llo_original>
// kernel: tpu_custom_call.1
$region0: #{tpu_custom_call.1}
  #allocation0 [shape = 'u32[]', space=smem, size = 0x4, offset = 0x4, fixed_abs, tag = 'smem constant byte address 0x4 - core index']
  #allocation1 [shape = 'u32[72,128]{1,0:T(1,128)}', space=vmem, size = 0x9000, scoped, tag = 'internal scratch']
  #allocation2 [shape = 'f32[8,128]{1,0:T(8,128)}', space=vmem, size = 0x1000, scoped, tag = 'scratch operand']
  %s0 = inlined_call_operand.hbm [shape: f32[16,128], index: 0, kind: input, shape index: {}]
  %s1 = inlined_call_operand.hbm [shape: f32[16,128], index: 1, kind: input, shape index: {}]
  %s2 = inlined_call_operand.hbm [shape: f32[8,128], index: 2, kind: output, shape index: {}]
  %s3 = sld [smem:[#allocation0]]
  $region34: #{tpu_custom_call.1} parent=0
    _
  %s5 = ssub.s32 1, %s3
  %s6 = scalar_select 0, %s5, %s3
  $region1: #{tpu_custom_call.1} parent=0
    #allocation3 [shape = 'u8[8192]{0}', space=vmem, size = 0x2000, scoped, tag = 'input window, operand 0, single buffered']
    #allocation4 [shape = 's32[1]{0}', space=sflag, size = 0x4, scoped, tag = 'scoped memory for tpu_custom_call.1']
    #allocation5 [shape = 's32[1]{0}', space=sflag, size = 0x4, scoped, tag = 'scoped memory for tpu_custom_call.1']
    #allocation6 [shape = 'u8[8192]{0}', space=vmem, size = 0x2000, scoped, tag = 'input window, operand 1, single buffered']
    #allocation7 [shape = 's32[1]{0}', space=sflag, size = 0x4, scoped, tag = 'scoped memory for tpu_custom_call.1']
    #allocation8 [shape = 'u8[4096]{0}', space=vmem, size = 0x1000, scoped, tag = 'output window, operand 0, single buffered']
    %7 = vsyncpa [#allocation4], 0
    %8 = vsyncpa [#allocation7], 0
    %9 = vsyncpa [#allocation5], 0
    // Predicated region
    $region2: #{tpu_custom_call.1} parent=1 // pred_check
      _
    $region3: #{tpu_custom_call.1} parent=1 // pred_check_branch
      %11 = sbr.rel (0) target = $region5
    $region4: #{tpu_custom_call.1} parent=1 // pred_region
      %s12 = sadd.s32 0, 0
      %p13 = scmp.lt.s32.totalorder %s12, 0
      %s14 = scalar_select %p13, %s12, 0
      %s15 = smul.u32 2, %s14
      %17 = vsyncadd [#allocation4], 0
      %s18 = smul.addr %s15, 8
      %s19 = scalar_lea.hbm %s0, %s18
      %s20 = sshll.u32 %s19, 4
      %s21 = int_to_ptr.hbm [resolvable:$true] %s20
      %s22 = sshll.u32 [#allocation3], 4
      %s23 = int_to_ptr.vmem [resolvable:$true] %s22
      %28 = dma.hbm_to_vmem [thread:$0]  %s21, 256, %s23, [#allocation4], 128, 128, 8
    $region5: #{tpu_custom_call.1} parent=1 // pred_fallthru
      _
    // Predicated region
    $region6: #{tpu_custom_call.1} parent=1 // pred_check
      _
    $region7: #{tpu_custom_call.1} parent=1 // pred_check_branch
      %30 = sbr.rel (0) target = $region9
    $region8: #{tpu_custom_call.1} parent=1 // pred_region
      %s31 = sadd.s32 0, 0
      %p32 = scmp.lt.s32.totalorder %s31, 0
      %s33 = scalar_select %p32, %s31, 0
      %s34 = smul.u32 2, %s33
      %36 = vsyncadd [#allocation7], 0
      %s37 = smul.addr %s34, 8
      %s38 = scalar_lea.hbm %s1, %s37
      %s39 = sshll.u32 %s38, 4
      %s40 = int_to_ptr.hbm [resolvable:$true] %s39
      %s41 = sshll.u32 [#allocation6], 4
      %s42 = int_to_ptr.vmem [resolvable:$true] %s41
      %47 = dma.hbm_to_vmem [thread:$0]  %s40, 256, %s42, [#allocation7], 128, 128, 8
    $region9: #{tpu_custom_call.1} parent=1 // pred_fallthru
      _
    // Predicated region
    $region10: #{tpu_custom_call.1} parent=1 // pred_check
      _
    $region11: #{tpu_custom_call.1} parent=1 // pred_check_branch
      %49 = sbr.rel (0) target = $region13
    $region12: #{tpu_custom_call.1} parent=1 // pred_region
      %51 = dma.done [#allocation4], 256
    $region13: #{tpu_custom_call.1} parent=1 // pred_fallthru
      _
    // Predicated region
    $region14: #{tpu_custom_call.1} parent=1 // pred_check
      _
    $region15: #{tpu_custom_call.1} parent=1 // pred_check_branch
      %53 = sbr.rel (0) target = $region17
    $region16: #{tpu_custom_call.1} parent=1 // pred_region
      %55 = dma.done [#allocation7], 256
    $region17: #{tpu_custom_call.1} parent=1 // pred_fallthru
      _
    %s56 = sadd.s32 0, 0
    %p57 = scmp.lt.s32.totalorder %s56, 0
    %s58 = scalar_select %p57, %s56, 0
    %s59 = smul.u32 2, %s58
    %s60 = sadd.s32 0, 0
    %p61 = scmp.lt.s32.totalorder %s60, 0
    %s62 = scalar_select %p61, %s60, 0
    %s63 = smul.u32 2, %s62
    %p64 = scmp.eq.s32.totalorder 0, 0
    // Predicated region
    $region18: #{tpu_custom_call.1} parent=1 // pred_check
      %p65 = pneg %p64
    $region19: #{tpu_custom_call.1} parent=1 // pred_check_branch
      %67 = sbr.rel (%p65) target = $region21
    $region20: #{tpu_custom_call.1} parent=1 // pred_region
      %68 = vst [vmem:[#allocation2] sm:$0xff] 0.0
    $region21: #{tpu_custom_call.1} parent=1 // pred_fallthru
      _
    %v69 = vld [vmem:[#allocation3] sm:$0xff]
    %v70 = vld [vmem:[#allocation3 + $0x8] sm:$0xff]
    %v71 = vld [vmem:[#allocation6] sm:$0xff]
    %v72 = vld [vmem:[#allocation6 + $0x8] sm:$0xff]
    %v73 = vsub.f32 %v69, %v71
    %v74 = vsub.f32 %v70, %v72
    %v75 = vadd.f32 %v73, 1e-12
    %v76 = vadd.f32 %v74, 1e-12
    %v77 = vand.u32 2147483647, %v75
    %v78 = vand.u32 2147483647, %v76
    %v79 = vmul.f32 %v77, -2.0
    %v80 = vmul.f32 %v78, -2.0
    %v81 = vmul.f32 %v79, 1.442695
    %v82 = vpow.pop %v81
    %v83 = vmul.f32 %v80, 1.442695
    %v84 = vpow.pop %v83
    %v85 = vadd.f32 %v82, 1.0
    %v86 = vadd.f32 %v84, 1.0
    %v87 = vlog2.pop %v85
    %v88 = vmul.f32 %v87, 0.6931472
    %v89 = vlog2.pop %v86
    %v90 = vmul.f32 %v89, 0.6931472
    %v91 = vadd.f32 %v77, %v88
    %v92 = vadd.f32 %v78, %v90
    %v93 = vld [vmem:[#allocation2] sm:$0xff]
    %v94 = vadd.f32 %v91, %v92
    %v95 = vadd.f32 %v93, %v94
    %96 = vst [vmem:[#allocation2] sm:$0xff] %v95
    // Predicated region
    $region22: #{tpu_custom_call.1} parent=1 // pred_check
      %p97 = pneg %p64
    $region23: #{tpu_custom_call.1} parent=1 // pred_check_branch
      %99 = sbr.rel (%p97) target = $region25
    $region24: #{tpu_custom_call.1} parent=1 // pred_region
      %v100 = vld [vmem:[#allocation2] sm:$0xff]
      %101 = vst [vmem:[#allocation8] sm:$0xff] %v100
    $region25: #{tpu_custom_call.1} parent=1 // pred_fallthru
      _
    // Predicated region
    $region26: #{tpu_custom_call.1} parent=1 // pred_check
      _
    $region27: #{tpu_custom_call.1} parent=1 // pred_check_branch
      %103 = sbr.rel (0) target = $region29
    $region28: #{tpu_custom_call.1} parent=1 // pred_region
      %105 = vsyncadd [#allocation5], 0
      %s107 = sshll.u32 [#allocation8], 4
      %s108 = int_to_ptr.vmem [resolvable:$true] %s107
      %s109 = sshll.u32 %s2, 4
      %s110 = int_to_ptr.hbm [resolvable:$true] %s109
      %112 = dma.vmem_to_hbm [thread:$0]  %s108, 128, %s110, [#allocation5]
    $region29: #{tpu_custom_call.1} parent=1 // pred_fallthru
      _
    // Predicated region
    $region30: #{tpu_custom_call.1} parent=1 // pred_check
      _
    $region31: #{tpu_custom_call.1} parent=1 // pred_check_branch
      %114 = sbr.rel (0) target = $region33
    $region32: #{tpu_custom_call.1} parent=1 // pred_region
      %116 = dma.done [#allocation5], 128
    $region33: #{tpu_custom_call.1} parent=1 // pred_fallthru
      _
    %117 = vsyncpa [#allocation4], 1
    %118 = vsyncpa [#allocation7], 1
    %119 = vsyncpa [#allocation5], 1

</llo_original>
